<compile_context>
chip_gen: v7x
topology: tpu7x:2x2x1
jax: 0.10.0
libtpu: 0.0.40
codegen_flags: <defaults>
</compile_context>

<pallas_src>
import functools

import jax
import jax.numpy as jnp
from jax.experimental import pallas as pl
from jax.experimental.pallas import tpu as pltpu

NEG_SLOPE = 0.01  # PyTorch nn.LeakyReLU default negative_slope
LANE = 128


def _leaky_relu(h):
    # max(h, a*h) == LeakyReLU(h) for 0 < a < 1: mul+max (2 VALU ops).
    return jnp.maximum(h, NEG_SLOPE * h)


def _round_up(x, m):
    return ((x + m - 1) // m) * m


# --------------------------------------------------------------------------- #
# Kernel                                                                       #
# --------------------------------------------------------------------------- #
def mlp_kernel(x_ref, w1_ref, b1_ref, w2_ref, b2_ref, w3_ref, b3_ref, o_ref):
    """Fused 3-layer MLP on one batch tile.

    bf16 MXU operands with f32 accumulation; bias add + LeakyReLU run in f32 on
    the VPU (portable to v5e, which lacks bf16 VALUs); activations are cast back
    to bf16 only as matmul inputs and for the final store.
    """
    x = x_ref[...].astype(jnp.bfloat16)                       # (TB, in_dim)

    h1 = jnp.dot(x, w1_ref[...], preferred_element_type=jnp.float32)
    h1 = _leaky_relu(h1 + b1_ref[...])                        # f32 (TB, hidden_p)

    h2 = jnp.dot(h1.astype(jnp.bfloat16), w2_ref[...],
                 preferred_element_type=jnp.float32)
    h2 = _leaky_relu(h2 + b2_ref[...])                        # f32 (TB, hidden_p)

    h3 = jnp.dot(h2.astype(jnp.bfloat16), w3_ref[...],
                 preferred_element_type=jnp.float32)
    h3 = _leaky_relu(h3 + b3_ref[...])                        # f32 (TB, out_pad)

    o_ref[...] = h3.astype(o_ref.dtype)                       # bf16 store


# --------------------------------------------------------------------------- #
# One-time parameter preparation (hoisted out of the per-call path)            #
# --------------------------------------------------------------------------- #
def prepare_params(w1, b1, w2, b2, w3, b3):
    """Call ONCE per parameter set (not per forward).

    * zero-pads hidden and output fan-outs (and matching fan-ins) to a
      multiple of 128 lanes -> lane-dense intermediates & unmasked stores,
    * casts weights to bf16 (MXU operands) and biases to f32.

    Zero padding stays inert through the network: LeakyReLU(0) = 0 and the
    padded fan-in rows of the next layer are zero as well.
    Returns ((w1,b1,w2,b2,w3,b3), out_dim) with W_l as [fan_in, fan_out].
    """
    in_dim, hidden = w1.shape
    out_dim = w3.shape[1]
    hp = _round_up(hidden, LANE)
    op = _round_up(out_dim, LANE)

    w1p = jnp.pad(w1, ((0, 0), (0, hp - hidden))).astype(jnp.bfloat16)
    b1p = jnp.pad(b1.reshape(1, -1), ((0, 0), (0, hp - hidden))).astype(jnp.float32)
    w2p = jnp.pad(w2, ((0, hp - hidden), (0, hp - hidden))).astype(jnp.bfloat16)
    b2p = jnp.pad(b2.reshape(1, -1), ((0, 0), (0, hp - hidden))).astype(jnp.float32)
    w3p = jnp.pad(w3, ((0, hp - hidden), (0, op - out_dim))).astype(jnp.bfloat16)
    b3p = jnp.pad(b3.reshape(1, -1), ((0, 0), (0, op - out_dim))).astype(jnp.float32)
    return (w1p, b1p, w2p, b2p, w3p, b3p), out_dim


# --------------------------------------------------------------------------- #
# Forward wrapper                                                              #
# --------------------------------------------------------------------------- #
@functools.partial(jax.jit, static_argnames=("out_dim", "block_b", "out_dtype"))
def mlp_forward(x, w1, b1, w2, b2, w3, b3, *, out_dim, block_b=512,
                out_dtype=jnp.float32):
    """Eval-mode MLP forward.

    x: [B, in_dim] or [B, S, in_dim] (squeeze(1)-style restore like the module).
    Weights/biases must come from prepare_params() (bf16, lane-padded).
    """
    squeeze_middle = x.ndim == 3
    if squeeze_middle:
        B, S, D = x.shape
        x2 = x.reshape(B * S, D)
    else:
        x2 = x

    B2, in_dim = x2.shape
    hidden_p = w1.shape[1]          # lane-padded hidden (multiple of 128)
    out_pad = w3.shape[1]           # lane-padded output (multiple of 128)
    x_bytes = jnp.dtype(x2.dtype).itemsize

    # ---- resident-operand VMEM footprint (single-buffered, Buffered(1)) -----
    weight_bytes = (w1.size + w2.size + w3.size) * 2            # bf16
    bias_bytes = 8 * (2 * hidden_p + out_pad) * 4               # (1,n) pads to 8 sublanes
    resident_bytes = weight_bytes + bias_bytes

    # ---- per-row VMEM cost of one batch tile ---------------------------------
    per_row = (2 * in_dim * x_bytes      # x tile, double-buffered
               + 2 * out_pad * 2         # bf16 out tile, double-buffered
               + 3 * hidden_p * 4)       # f32 h1/h2 + bf16 matmul copies

    # ---- batch tile: multiple of 16, VMEM-budgeted, >=4 tiles when possible --
    vmem_budget = 44 * 1024 * 1024       # conservative: v7x has 64 MiB physical
    avail = max(vmem_budget - resident_bytes, 32 * per_row)
    tb = min(block_b, max(16, (avail // per_row) // 16 * 16))
    tb = min(tb, _round_up(B2, 16))
    if B2 >= 4 * 128:
        # >= 4 grid steps (2 per TensorCore on v7x megacore) once batch allows
        tb = min(tb, max(128, _round_up(-(-B2 // 4), 16)))

    B2p = _round_up(B2, tb)
    if B2p != B2:
        x2 = jnp.pad(x2, ((0, B2p - B2), (0, 0)))
    grid = (B2p // tb,)

    batch_map = lambda i: (i, 0)
    const_map = lambda i: (0, 0)      # weights/biases resident across the grid
    resident = lambda shape: pl.BlockSpec(shape, const_map,
                                          pipeline_mode=pl.Buffered(1))

    vmem_estimate = resident_bytes + tb * per_row + (2 << 20)
    vmem_limit = int(min(max(vmem_estimate * 3 // 2, 32 << 20), 100 << 20))

    flops = 2 * B2p * (in_dim * hidden_p + hidden_p * hidden_p
                       + hidden_p * out_pad)
    bytes_accessed = (B2p * in_dim * x_bytes + weight_bytes + bias_bytes
                      + B2p * out_pad * 2)

    out = pl.pallas_call(
        mlp_kernel,
        out_shape=jax.ShapeDtypeStruct((B2p, out_pad), jnp.bfloat16),
        grid_spec=pltpu.PrefetchScalarGridSpec(
            num_scalar_prefetch=0,
            grid=grid,
            in_specs=[
                pl.BlockSpec((tb, in_dim), batch_map),     # x tile (pipelined)
                resident((in_dim, hidden_p)),              # W1
                resident((1, hidden_p)),                   # b1
                resident((hidden_p, hidden_p)),            # W2
                resident((1, hidden_p)),                   # b2
                resident((hidden_p, out_pad)),             # W3
                resident((1, out_pad)),                    # b3
            ],
            out_specs=pl.BlockSpec((tb, out_pad), batch_map),
        ),
        compiler_params=pltpu.CompilerParams(
            dimension_semantics=("parallel",),
            vmem_limit_bytes=vmem_limit,
        ),
        cost_estimate=pl.CostEstimate(
            flops=flops, transcendentals=0, bytes_accessed=bytes_accessed),
    )(x2, w1, b1, w2, b2, w3, b3)

    # strip batch padding and output-lane padding; upcast only if requested
    out = out[:B2, :out_dim]
    if out.dtype != out_dtype:
        out = out.astype(out_dtype)

    if squeeze_middle:
        out = out.reshape(B, S, out_dim)
        if S == 1:   # forward(): return logits.squeeze(1) when the result is 3-D
            out = out.reshape(B, out_dim)
    return out


# --------------------------------------------------------------------------- #
# Deterministic PyTorch-style init + self-test                                 #
# --------------------------------------------------------------------------- #
def init_linear(key, fan_in, fan_out):
    """nn.Linear init: U(-1/sqrt(fan_in), 1/sqrt(fan_in)); weight already
    transposed to [fan_in, fan_out]; bias as [1, fan_out]."""
    kw, kb = jax.random.split(key)
    bound = 1.0 / jnp.sqrt(fan_in)
    w = jax.random.uniform(kw, (fan_in, fan_out), jnp.float32, -bound, bound)
    b = jax.random.uniform(kb, (1, fan_out), jnp.float32, -bound, bound)
    return w, b


if __name__ == "__main__":
    # Small, module-consistent sizes: batch=8, in_dim=64, hidden=32, output=8
    B, IN_DIM, HIDDEN, OUT = 8, 64, 32, 8

    key = jax.random.PRNGKey(0)
    k_x, k1, k2, k3 = jax.random.split(key, 4)

    x = jax.random.normal(k_x, (B, IN_DIM), jnp.float32)

    w1, b1 = init_linear(k1, IN_DIM, HIDDEN)
    w2, b2 = init_linear(k2, HIDDEN, HIDDEN)
    w3, b3 = init_linear(k3, HIDDEN, OUT)

    # One-time hoisted cast/pad of the parameters (off the per-call hot path).
    params, out_dim = prepare_params(w1, b1, w2, b2, w3, b3)

    y = mlp_forward(x, *params, out_dim=out_dim)
    y = jax.block_until_ready(y)

    # Pure-JAX f32 reference (eval-mode forward, unpadded weights)
    def ref(xv):
        h = jnp.maximum(xv @ w1 + b1, NEG_SLOPE * (xv @ w1 + b1))
        h = jnp.maximum(h @ w2 + b2, NEG_SLOPE * (h @ w2 + b2))
        h = jnp.maximum(h @ w3 + b3, NEG_SLOPE * (h @ w3 + b3))
        return h

    assert y.shape == (B, OUT)
    # bf16 MXU operands => relaxed tolerance vs the f32 reference
    assert jnp.allclose(y, ref(x), atol=3e-2, rtol=3e-2), "mismatch vs reference"

    # Also exercise the 3-D squeeze(1) path
    x3 = x.reshape(B, 1, IN_DIM)
    y3 = jax.block_until_ready(mlp_forward(x3, *params, out_dim=out_dim))
    assert y3.shape == (B, OUT)
    assert jnp.allclose(y3, y, atol=1e-6, rtol=1e-6)

    print("KERNEL_OK")
</pallas_src>

<mosaic_0001>
module attributes {stable_mosaic.version = 11 : i64} {
  func.func @mlp_kernel(%arg0: i32, %arg1: memref<16x64xf32, #tpu.memory_space<vmem>>, %arg2: memref<64x128xbf16, #tpu.memory_space<vmem>>, %arg3: memref<1x128xf32, #tpu.memory_space<vmem>>, %arg4: memref<128x128xbf16, #tpu.memory_space<vmem>>, %arg5: memref<1x128xf32, #tpu.memory_space<vmem>>, %arg6: memref<128x128xbf16, #tpu.memory_space<vmem>>, %arg7: memref<1x128xf32, #tpu.memory_space<vmem>>, %arg8: memref<16x128xbf16, #tpu.memory_space<vmem>>) attributes {dimension_semantics = [#tpu.dimension_semantics<parallel>], iteration_bounds = array<i64: 1>, scalar_prefetch = 0 : i64, scratch_operands = 0 : i64, tpu.core_type = #tpu.core_type<tc>, window_params = [{transform_indices = @transform_0, window_bounds = array<i64: 16, 64>}, {pipeline_mode = #tpu.pipeline_mode<synchronous>, transform_indices = @transform_1, window_bounds = array<i64: 64, 128>}, {pipeline_mode = #tpu.pipeline_mode<synchronous>, transform_indices = @transform_2, window_bounds = array<i64: 1, 128>}, {pipeline_mode = #tpu.pipeline_mode<synchronous>, transform_indices = @transform_3, window_bounds = array<i64: 128, 128>}, {pipeline_mode = #tpu.pipeline_mode<synchronous>, transform_indices = @transform_4, window_bounds = array<i64: 1, 128>}, {pipeline_mode = #tpu.pipeline_mode<synchronous>, transform_indices = @transform_5, window_bounds = array<i64: 128, 128>}, {pipeline_mode = #tpu.pipeline_mode<synchronous>, transform_indices = @transform_6, window_bounds = array<i64: 1, 128>}, {transform_indices = @transform_7, window_bounds = array<i64: 16, 128>}]} {
    %c0 = arith.constant 0 : index
    %c0_0 = arith.constant 0 : index
    %0 = vector.load %arg1[%c0, %c0_0] : memref<16x64xf32, #tpu.memory_space<vmem>>, vector<16x64xf32>
    %1 = arith.truncf %0 : vector<16x64xf32> to vector<16x64xbf16>
    %c0_1 = arith.constant 0 : index
    %c0_2 = arith.constant 0 : index
    %2 = vector.load %arg2[%c0_1, %c0_2] : memref<64x128xbf16, #tpu.memory_space<vmem>>, vector<64x128xbf16>
    %cst = arith.constant dense<0.000000e+00> : vector<16x128xf32>
    %3 = tpu.matmul %1, %2, %cst {dimension_numbers = #tpu.dot_dimension_numbers<[1], [0], [0], [1], [0, 0, 1, 1], [], []>} : vector<16x64xbf16>, vector<64x128xbf16>, vector<16x128xf32> -> vector<16x128xf32>
    %c0_3 = arith.constant 0 : index
    %c0_4 = arith.constant 0 : index
    %4 = vector.load %arg3[%c0_3, %c0_4] : memref<1x128xf32, #tpu.memory_space<vmem>>, vector<1x128xf32>
    %5 = vector.broadcast %4 : vector<1x128xf32> to vector<16x128xf32>
    %6 = arith.addf %3, %5 : vector<16x128xf32>
    %cst_5 = arith.constant 0.00999999977 : f32
    %7 = vector.broadcast %cst_5 : f32 to vector<16x128xf32>
    %8 = arith.mulf %7, %6 : vector<16x128xf32>
    %9 = arith.maximumf %6, %8 : vector<16x128xf32>
    %10 = arith.truncf %9 : vector<16x128xf32> to vector<16x128xbf16>
    %c0_6 = arith.constant 0 : index
    %c0_7 = arith.constant 0 : index
    %11 = vector.load %arg4[%c0_6, %c0_7] : memref<128x128xbf16, #tpu.memory_space<vmem>>, vector<128x128xbf16>
    %cst_8 = arith.constant dense<0.000000e+00> : vector<16x128xf32>
    %12 = tpu.matmul %10, %11, %cst_8 {dimension_numbers = #tpu.dot_dimension_numbers<[1], [0], [0], [1], [0, 0, 1, 1], [], []>} : vector<16x128xbf16>, vector<128x128xbf16>, vector<16x128xf32> -> vector<16x128xf32>
    %c0_9 = arith.constant 0 : index
    %c0_10 = arith.constant 0 : index
    %13 = vector.load %arg5[%c0_9, %c0_10] : memref<1x128xf32, #tpu.memory_space<vmem>>, vector<1x128xf32>
    %14 = vector.broadcast %13 : vector<1x128xf32> to vector<16x128xf32>
    %15 = arith.addf %12, %14 : vector<16x128xf32>
    %cst_11 = arith.constant 0.00999999977 : f32
    %16 = vector.broadcast %cst_11 : f32 to vector<16x128xf32>
    %17 = arith.mulf %16, %15 : vector<16x128xf32>
    %18 = arith.maximumf %15, %17 : vector<16x128xf32>
    %19 = arith.truncf %18 : vector<16x128xf32> to vector<16x128xbf16>
    %c0_12 = arith.constant 0 : index
    %c0_13 = arith.constant 0 : index
    %20 = vector.load %arg6[%c0_12, %c0_13] : memref<128x128xbf16, #tpu.memory_space<vmem>>, vector<128x128xbf16>
    %cst_14 = arith.constant dense<0.000000e+00> : vector<16x128xf32>
    %21 = tpu.matmul %19, %20, %cst_14 {dimension_numbers = #tpu.dot_dimension_numbers<[1], [0], [0], [1], [0, 0, 1, 1], [], []>} : vector<16x128xbf16>, vector<128x128xbf16>, vector<16x128xf32> -> vector<16x128xf32>
    %c0_15 = arith.constant 0 : index
    %c0_16 = arith.constant 0 : index
    %22 = vector.load %arg7[%c0_15, %c0_16] : memref<1x128xf32, #tpu.memory_space<vmem>>, vector<1x128xf32>
    %23 = vector.broadcast %22 : vector<1x128xf32> to vector<16x128xf32>
    %24 = arith.addf %21, %23 : vector<16x128xf32>
    %cst_17 = arith.constant 0.00999999977 : f32
    %25 = vector.broadcast %cst_17 : f32 to vector<16x128xf32>
    %26 = arith.mulf %25, %24 : vector<16x128xf32>
    %27 = arith.maximumf %24, %26 : vector<16x128xf32>
    %28 = arith.truncf %27 : vector<16x128xf32> to vector<16x128xbf16>
    %c0_18 = arith.constant 0 : index
    %c0_19 = arith.constant 0 : index
    %29 = vector.load %arg8[%c0_18, %c0_19] : memref<16x128xbf16, #tpu.memory_space<vmem>>, vector<16x128xbf16>
    tpu.vector_store %arg8[%c0_18, %c0_19], %28 {strides = array<i32>} : memref<16x128xbf16, #tpu.memory_space<vmem>>, vector<16x128xbf16>,
    return
  }
  func.func @transform_0(%arg0: i32) -> (i32, i32) {
    %c0_i32 = arith.constant 0 : i32
    %c0_i32_0 = arith.constant 0 : i32
    return %arg0, %c0_i32 : i32, i32
  }
  func.func @transform_1(%arg0: i32) -> (i32, i32) {
    %c0_i32 = arith.constant 0 : i32
    %c0_i32_0 = arith.constant 0 : i32
    %c0_i32_1 = arith.constant 0 : i32
    return %c0_i32, %c0_i32_0 : i32, i32
  }
  func.func @transform_2(%arg0: i32) -> (i32, i32) {
    %c0_i32 = arith.constant 0 : i32
    %c0_i32_0 = arith.constant 0 : i32
    %c0_i32_1 = arith.constant 0 : i32
    return %c0_i32, %c0_i32_0 : i32, i32
  }
  func.func @transform_3(%arg0: i32) -> (i32, i32) {
    %c0_i32 = arith.constant 0 : i32
    %c0_i32_0 = arith.constant 0 : i32
    %c0_i32_1 = arith.constant 0 : i32
    return %c0_i32, %c0_i32_0 : i32, i32
  }
  func.func @transform_4(%arg0: i32) -> (i32, i32) {
    %c0_i32 = arith.constant 0 : i32
    %c0_i32_0 = arith.constant 0 : i32
    %c0_i32_1 = arith.constant 0 : i32
    return %c0_i32, %c0_i32_0 : i32, i32
  }
  func.func @transform_5(%arg0: i32) -> (i32, i32) {
    %c0_i32 = arith.constant 0 : i32
    %c0_i32_0 = arith.constant 0 : i32
    %c0_i32_1 = arith.constant 0 : i32
    return %c0_i32, %c0_i32_0 : i32, i32
  }
  func.func @transform_6(%arg0: i32) -> (i32, i32) {
    %c0_i32 = arith.constant 0 : i32
    %c0_i32_0 = arith.constant 0 : i32
    %c0_i32_1 = arith.constant 0 : i32
    return %c0_i32, %c0_i32_0 : i32, i32
  }
  func.func @transform_7(%arg0: i32) -> (i32, i32) {
    %c0_i32 = arith.constant 0 : i32
    %c0_i32_0 = arith.constant 0 : i32
    return %arg0, %c0_i32 : i32, i32
  }
}

</mosaic_0001>

<llo_original>
// kernel: mlp_forward.1
$region0: #{mlp_forward.1}
  #allocation0 [shape = 'u32[]', space=smem, size = 0x4, offset = 0x4, fixed_abs, tag = 'smem constant byte address 0x4 - core index']
  #allocation1 [shape = 'u32[144,128]{1,0:T(1,128)}', space=vmem, size = 0x12000, scoped, tag = 'internal scratch']
  %s0 = inlined_call_operand.vmem [shape: f32[16,64], index: 0, kind: input, shape index: {}]
  %s1 = inlined_call_operand.hbm [shape: bf16[64,128], index: 1, kind: input, shape index: {}]
  %s2 = inlined_call_operand.vmem [shape: f32[1,128], index: 2, kind: input, shape index: {}]
  %s3 = inlined_call_operand.hbm [shape: bf16[128,128], index: 3, kind: input, shape index: {}]
  %s4 = inlined_call_operand.vmem [shape: f32[1,128], index: 4, kind: input, shape index: {}]
  %s5 = inlined_call_operand.hbm [shape: bf16[128,128], index: 5, kind: input, shape index: {}]
  %s6 = inlined_call_operand.vmem [shape: f32[1,128], index: 6, kind: input, shape index: {}]
  %s7 = inlined_call_operand.vmem [shape: bf16[16,128], index: 7, kind: output, shape index: {}]
  %s8 = sld [smem:[#allocation0]]
  $region50: #{mlp_forward.1} parent=0
    _
  %s10 = ssub.s32 1, %s8
  %s11 = scalar_select 0, %s10, %s8
  $region1: #{mlp_forward.1} parent=0
    #allocation2 [shape = 'u8[16384]{0}', space=vmem, size = 0x4000, scoped, tag = 'input window, operand 1, single buffered']
    #allocation3 [shape = 's32[1]{0}', space=sflag, size = 0x4, scoped, tag = 'scoped memory for mlp_forward.1']
    #allocation4 [shape = 'u8[32768]{0}', space=vmem, size = 0x8000, scoped, tag = 'input window, operand 3, single buffered']
    #allocation5 [shape = 's32[1]{0}', space=sflag, size = 0x4, scoped, tag = 'scoped memory for mlp_forward.1']
    #allocation6 [shape = 'u8[32768]{0}', space=vmem, size = 0x8000, scoped, tag = 'input window, operand 5, single buffered']
    %12 = vsyncpa [#allocation3], 0
    %13 = vsyncpa [#allocation5], 0
    // Predicated region
    $region2: #{mlp_forward.1} parent=1 // pred_check
      _
    $region3: #{mlp_forward.1} parent=1 // pred_check_branch
      %15 = sbr.rel (0) target = $region5
    $region4: #{mlp_forward.1} parent=1 // pred_region
      _
    $region5: #{mlp_forward.1} parent=1 // pred_fallthru
      _
    // Predicated region
    $region6: #{mlp_forward.1} parent=1 // pred_check
      _
    $region7: #{mlp_forward.1} parent=1 // pred_check_branch
      %17 = sbr.rel (0) target = $region9
    $region8: #{mlp_forward.1} parent=1 // pred_region
      %s19 = ssub.s32 512, 512
      %20 = vsyncadd [#allocation3], %s19
      %s21 = sshll.u32 [#allocation2], 4
      %s22 = int_to_ptr.vmem [resolvable:$true] %s21
      %27 = dma.hbm_to_vmem [thread:$0]  %s1, 512, %s22, [#allocation3], 64, 64, 4
    $region9: #{mlp_forward.1} parent=1 // pred_fallthru
      _
    // Predicated region
    $region10: #{mlp_forward.1} parent=1 // pred_check
      _
    $region11: #{mlp_forward.1} parent=1 // pred_check_branch
      %29 = sbr.rel (0) target = $region13
    $region12: #{mlp_forward.1} parent=1 // pred_region
      _
    $region13: #{mlp_forward.1} parent=1 // pred_fallthru
      _
    // Predicated region
    $region14: #{mlp_forward.1} parent=1 // pred_check
      _
    $region15: #{mlp_forward.1} parent=1 // pred_check_branch
      %31 = sbr.rel (0) target = $region17
    $region16: #{mlp_forward.1} parent=1 // pred_region
      %s33 = ssub.s32 1024, 1024
      %34 = vsyncadd [#allocation5], %s33
      %s35 = sshll.u32 [#allocation4], 4
      %s36 = int_to_ptr.vmem [resolvable:$true] %s35
      %41 = dma.hbm_to_vmem [thread:$0]  %s3, 1024, %s36, [#allocation5], 64, 64, 4
    $region17: #{mlp_forward.1} parent=1 // pred_fallthru
      _
    // Predicated region
    $region18: #{mlp_forward.1} parent=1 // pred_check
      _
    $region19: #{mlp_forward.1} parent=1 // pred_check_branch
      %43 = sbr.rel (0) target = $region21
    $region20: #{mlp_forward.1} parent=1 // pred_region
      _
    $region21: #{mlp_forward.1} parent=1 // pred_fallthru
      _
    // Predicated region
    $region22: #{mlp_forward.1} parent=1 // pred_check
      _
    $region23: #{mlp_forward.1} parent=1 // pred_check_branch
      %45 = sbr.rel (0) target = $region25
    $region24: #{mlp_forward.1} parent=1 // pred_region
      %s47 = ssub.s32 1024, 1024
      %48 = vsyncadd [#allocation5], %s47
      %s49 = sshll.u32 [#allocation6], 4
      %s50 = int_to_ptr.vmem [resolvable:$true] %s49
      %55 = dma.hbm_to_vmem [thread:$0]  %s5, 1024, %s50, [#allocation5], 64, 64, 4
    $region25: #{mlp_forward.1} parent=1 // pred_fallthru
      _
    // Predicated region
    $region26: #{mlp_forward.1} parent=1 // pred_check
      _
    $region27: #{mlp_forward.1} parent=1 // pred_check_branch
      %57 = sbr.rel (0) target = $region29
    $region28: #{mlp_forward.1} parent=1 // pred_region
      _
    $region29: #{mlp_forward.1} parent=1 // pred_fallthru
      _
    // Predicated region
    $region30: #{mlp_forward.1} parent=1 // pred_check
      _
    $region31: #{mlp_forward.1} parent=1 // pred_check_branch
      %59 = sbr.rel (0) target = $region33
    $region32: #{mlp_forward.1} parent=1 // pred_region
      %60 = dma.done [#allocation3], 512
    $region33: #{mlp_forward.1} parent=1 // pred_fallthru
      _
    // Predicated region
    $region34: #{mlp_forward.1} parent=1 // pred_check
      _
    $region35: #{mlp_forward.1} parent=1 // pred_check_branch
      %62 = sbr.rel (0) target = $region37
    $region36: #{mlp_forward.1} parent=1 // pred_region
      %63 = dma.done [#allocation5], 1024
    $region37: #{mlp_forward.1} parent=1 // pred_fallthru
      _
    // Predicated region
    $region38: #{mlp_forward.1} parent=1 // pred_check
      _
    $region39: #{mlp_forward.1} parent=1 // pred_check_branch
      %65 = sbr.rel (0) target = $region41
    $region40: #{mlp_forward.1} parent=1 // pred_region
      %66 = dma.done [#allocation5], 1024
    $region41: #{mlp_forward.1} parent=1 // pred_fallthru
      _
    %v68 = vld [vmem:[%s0] sm:$0xff]
    %v69 = vld [vmem:[%s0 + $0x8] sm:$0xff]
    %v70 = vpack.c.bf16 %v69, %v68
    %v71 = vld [vmem:[#allocation2] sm:$0xf]
    %v72 = vld [vmem:[#allocation2 + $0x4] sm:$0xf]
    %v73 = vld [vmem:[#allocation2 + $0x8] sm:$0xf]
    %v74 = vld [vmem:[#allocation2 + $0xc] sm:$0xf]
    %v75 = vld [vmem:[#allocation2 + $0x10] sm:$0xf]
    %v76 = vld [vmem:[#allocation2 + $0x14] sm:$0xf]
    %v77 = vld [vmem:[#allocation2 + $0x18] sm:$0xf]
    %v78 = vld [vmem:[#allocation2 + $0x1c] sm:$0xf]
    %v79 = vld [vmem:[%s2] sm:$0x1]
    %v81 = vlaneseq
    %v82 = vshrl.u32 %v81, 7
    %v83 = vsub.s32 0, %v82
    %v84 = vrot.slane %v79, %v83
    %v94 = vunpack.c.l.b16 %v71
    %v95 = vunpack.c.l.b16 %v72
    %v96 = vunpack.c.l.b16 %v73
    %v97 = vunpack.c.l.b16 %v74
    %v98 = vunpack.c.l.b16 %v75
    %v99 = vunpack.c.l.b16 %v76
    %v100 = vunpack.c.l.b16 %v77
    %v101 = vunpack.c.l.b16 %v78
    %v102 = vpack.c.b16 %v95, %v94
    %v103 = vpack.c.b16 %v97, %v96
    %v104 = vpack.c.b16 %v99, %v98
    %v105 = vpack.c.b16 %v101, %v100
    %vm110 = vcmask 523264
    %v112 = vsel %vm110, %v70, 0
    %114 = vmatprep.subr.bf16.mxu0 0
    %115 = vmatpush1.bf16.msra.mxu0 %v102
    %116 = vmatprep.subr.bf16.mxu0 0
    %117 = vmatpush1.bf16.msra.mxu0 %v103
    %118 = vmatprep.subr.bf16.mxu0 0
    %119 = vmatpush1.bf16.msra.mxu0 %v104
    %120 = vmatprep.subr.bf16.mxu0 0
    %121 = vmatpush1.bf16.msra.mxu0 %v105
    %122 = vmatprep.subr.bf16.mxu0 0
    %123 = vmatpush1.bf16.msra.mxu0 0
    %124 = vmatprep.subr.bf16.mxu0 0
    %125 = vmatpush1.bf16.msra.mxu0 0
    %126 = vmatprep.subr.bf16.mxu0 0
    %127 = vmatpush1.bf16.msra.mxu0 0
    %128 = vmatprep.subr.bf16.mxu0 0
    %129 = vmatpush1.bf16.msra.mxu0 0
    %130 = vmatprep.subr.bf16.mxu0 0
    %131 = vmatpush1.bf16.msra.mxu0 0
    %132 = vmatprep.subr.bf16.mxu0 0
    %133 = vmatpush1.bf16.msra.mxu0 0
    %134 = vmatprep.subr.bf16.mxu0 0
    %135 = vmatpush1.bf16.msra.mxu0 0
    %136 = vmatprep.subr.bf16.mxu0 0
    %137 = vmatpush1.bf16.msra.mxu0 0
    %138 = vmatprep.subr.bf16.mxu0 0
    %139 = vmatpush1.bf16.msra.mxu0 0
    %140 = vmatprep.subr.bf16.mxu0 0
    %141 = vmatpush1.bf16.msra.mxu0 0
    %142 = vmatprep.subr.bf16.mxu0 0
    %143 = vmatpush1.bf16.msra.mxu0 0
    %144 = vmatprep.subr.bf16.mxu0 0
    %145 = vmatpush1.bf16.msra.mxu0 0
    %146 = vmatprep.mubr.bf16.mxu0 0
    %147 = vmatmul.mubr.bf16.gmra.mrb[0].mxu0 %v112
    %v148 = vpop.f32.mrb[0].mxu0
    %v149 = vadd.f32 %v84, %v148
    %v150 = vpop.f32.mrb[0].mxu0
    %v151 = vpop.f32.mrb[0].mxu0
    %v152 = vadd.f32 %v84, %v151
    %v153 = vpop.f32.mrb[0].mxu0
    %154 = vdwg.mxu0
    %v155 = vmul.f32 %v149, 0.01
    %v156 = vmul.f32 %v152, 0.01
    %v157 = vmax.f32 %v149, %v155
    %v158 = vmax.f32 %v152, %v156
    %v159 = vpack.c.bf16 %v158, %v157
    %v160 = vld [vmem:[#allocation4] sm:$0xf]
    %v161 = vld [vmem:[#allocation4 + $0x4] sm:$0xf]
    %v162 = vld [vmem:[#allocation4 + $0x8] sm:$0xf]
    %v163 = vld [vmem:[#allocation4 + $0xc] sm:$0xf]
    %v164 = vld [vmem:[#allocation4 + $0x10] sm:$0xf]
    %v165 = vld [vmem:[#allocation4 + $0x14] sm:$0xf]
    %v166 = vld [vmem:[#allocation4 + $0x18] sm:$0xf]
    %v167 = vld [vmem:[#allocation4 + $0x1c] sm:$0xf]
    %v168 = vld [vmem:[#allocation4 + $0x20] sm:$0xf]
    %v169 = vld [vmem:[#allocation4 + $0x24] sm:$0xf]
    %v170 = vld [vmem:[#allocation4 + $0x28] sm:$0xf]
    %v171 = vld [vmem:[#allocation4 + $0x2c] sm:$0xf]
    %v172 = vld [vmem:[#allocation4 + $0x30] sm:$0xf]
    %v173 = vld [vmem:[#allocation4 + $0x34] sm:$0xf]
    %v174 = vld [vmem:[#allocation4 + $0x38] sm:$0xf]
    %v175 = vld [vmem:[#allocation4 + $0x3c] sm:$0xf]
    %v176 = vld [vmem:[%s4] sm:$0x1]
    %v178 = vlaneseq
    %v179 = vshrl.u32 %v178, 7
    %v180 = vsub.s32 0, %v179
    %v181 = vrot.slane %v176, %v180
    %v199 = vunpack.c.l.b16 %v160
    %v200 = vunpack.c.l.b16 %v161
    %v201 = vunpack.c.l.b16 %v162
    %v202 = vunpack.c.l.b16 %v163
    %v203 = vunpack.c.l.b16 %v164
    %v204 = vunpack.c.l.b16 %v165
    %v205 = vunpack.c.l.b16 %v166
    %v206 = vunpack.c.l.b16 %v167
    %v207 = vunpack.c.l.b16 %v168
    %v208 = vunpack.c.l.b16 %v169
    %v209 = vunpack.c.l.b16 %v170
    %v210 = vunpack.c.l.b16 %v171
    %v211 = vunpack.c.l.b16 %v172
    %v212 = vunpack.c.l.b16 %v173
    %v213 = vunpack.c.l.b16 %v174
    %v214 = vunpack.c.l.b16 %v175
    %v215 = vpack.c.b16 %v200, %v199
    %v216 = vpack.c.b16 %v202, %v201
    %v217 = vpack.c.b16 %v204, %v203
    %v218 = vpack.c.b16 %v206, %v205
    %v219 = vpack.c.b16 %v208, %v207
    %v220 = vpack.c.b16 %v210, %v209
    %v221 = vpack.c.b16 %v212, %v211
    %v222 = vpack.c.b16 %v214, %v213
    %231 = vmatprep.subr.bf16.mxu0 0
    %232 = vmatpush1.bf16.msra.mxu0 %v215
    %233 = vmatprep.subr.bf16.mxu0 0
    %234 = vmatpush1.bf16.msra.mxu0 %v216
    %235 = vmatprep.subr.bf16.mxu0 0
    %236 = vmatpush1.bf16.msra.mxu0 %v217
    %237 = vmatprep.subr.bf16.mxu0 0
    %238 = vmatpush1.bf16.msra.mxu0 %v218
    %239 = vmatprep.subr.bf16.mxu0 0
    %240 = vmatpush1.bf16.msra.mxu0 %v219
    %241 = vmatprep.subr.bf16.mxu0 0
    %242 = vmatpush1.bf16.msra.mxu0 %v220
    %243 = vmatprep.subr.bf16.mxu0 0
    %244 = vmatpush1.bf16.msra.mxu0 %v221
    %245 = vmatprep.subr.bf16.mxu0 0
    %246 = vmatpush1.bf16.msra.mxu0 %v222
    %247 = vmatprep.subr.bf16.mxu0 0
    %248 = vmatpush1.bf16.msra.mxu0 0
    %249 = vmatprep.subr.bf16.mxu0 0
    %250 = vmatpush1.bf16.msra.mxu0 0
    %251 = vmatprep.subr.bf16.mxu0 0
    %252 = vmatpush1.bf16.msra.mxu0 0
    %253 = vmatprep.subr.bf16.mxu0 0
    %254 = vmatpush1.bf16.msra.mxu0 0
    %255 = vmatprep.subr.bf16.mxu0 0
    %256 = vmatpush1.bf16.msra.mxu0 0
    %257 = vmatprep.subr.bf16.mxu0 0
    %258 = vmatpush1.bf16.msra.mxu0 0
    %259 = vmatprep.subr.bf16.mxu0 0
    %260 = vmatpush1.bf16.msra.mxu0 0
    %261 = vmatprep.subr.bf16.mxu0 0
    %262 = vmatpush1.bf16.msra.mxu0 0
    %263 = vmatprep.mubr.bf16.mxu0 0
    %264 = vmatmul.mubr.bf16.gmra.mrb[0].mxu0 %v159
    %v265 = vpop.f32.mrb[0].mxu0
    %v266 = vadd.f32 %v181, %v265
    %v267 = vpop.f32.mrb[0].mxu0
    %v268 = vpop.f32.mrb[0].mxu0
    %v269 = vadd.f32 %v181, %v268
    %v270 = vpop.f32.mrb[0].mxu0
    %271 = vdwg.mxu0
    %v272 = vmul.f32 %v266, 0.01
    %v273 = vmul.f32 %v269, 0.01
    %v274 = vmax.f32 %v266, %v272
    %v275 = vmax.f32 %v269, %v273
    %v276 = vpack.c.bf16 %v275, %v274
    %v277 = vld [vmem:[#allocation6] sm:$0xf]
    %v278 = vld [vmem:[#allocation6 + $0x4] sm:$0xf]
    %v279 = vld [vmem:[#allocation6 + $0x8] sm:$0xf]
    %v280 = vld [vmem:[#allocation6 + $0xc] sm:$0xf]
    %v281 = vld [vmem:[#allocation6 + $0x10] sm:$0xf]
    %v282 = vld [vmem:[#allocation6 + $0x14] sm:$0xf]
    %v283 = vld [vmem:[#allocation6 + $0x18] sm:$0xf]
    %v284 = vld [vmem:[#allocation6 + $0x1c] sm:$0xf]
    %v285 = vld [vmem:[#allocation6 + $0x20] sm:$0xf]
    %v286 = vld [vmem:[#allocation6 + $0x24] sm:$0xf]
    %v287 = vld [vmem:[#allocation6 + $0x28] sm:$0xf]
    %v288 = vld [vmem:[#allocation6 + $0x2c] sm:$0xf]
    %v289 = vld [vmem:[#allocation6 + $0x30] sm:$0xf]
    %v290 = vld [vmem:[#allocation6 + $0x34] sm:$0xf]
    %v291 = vld [vmem:[#allocation6 + $0x38] sm:$0xf]
    %v292 = vld [vmem:[#allocation6 + $0x3c] sm:$0xf]
    %v293 = vld [vmem:[%s6] sm:$0x1]
    %v295 = vlaneseq
    %v296 = vshrl.u32 %v295, 7
    %v297 = vsub.s32 0, %v296
    %v298 = vrot.slane %v293, %v297
    %v316 = vunpack.c.l.b16 %v277
    %v317 = vunpack.c.l.b16 %v278
    %v318 = vunpack.c.l.b16 %v279
    %v319 = vunpack.c.l.b16 %v280
    %v320 = vunpack.c.l.b16 %v281
    %v321 = vunpack.c.l.b16 %v282
    %v322 = vunpack.c.l.b16 %v283
    %v323 = vunpack.c.l.b16 %v284
    %v324 = vunpack.c.l.b16 %v285
    %v325 = vunpack.c.l.b16 %v286
    %v326 = vunpack.c.l.b16 %v287
    %v327 = vunpack.c.l.b16 %v288
    %v328 = vunpack.c.l.b16 %v289
    %v329 = vunpack.c.l.b16 %v290
    %v330 = vunpack.c.l.b16 %v291
    %v331 = vunpack.c.l.b16 %v292
    %v332 = vpack.c.b16 %v317, %v316
    %v333 = vpack.c.b16 %v319, %v318
    %v334 = vpack.c.b16 %v321, %v320
    %v335 = vpack.c.b16 %v323, %v322
    %v336 = vpack.c.b16 %v325, %v324
    %v337 = vpack.c.b16 %v327, %v326
    %v338 = vpack.c.b16 %v329, %v328
    %v339 = vpack.c.b16 %v331, %v330
    %348 = vmatprep.subr.bf16.mxu0 0
    %349 = vmatpush1.bf16.msra.mxu0 %v332
    %350 = vmatprep.subr.bf16.mxu0 0
    %351 = vmatpush1.bf16.msra.mxu0 %v333
    %352 = vmatprep.subr.bf16.mxu0 0
    %353 = vmatpush1.bf16.msra.mxu0 %v334
    %354 = vmatprep.subr.bf16.mxu0 0
    %355 = vmatpush1.bf16.msra.mxu0 %v335
    %356 = vmatprep.subr.bf16.mxu0 0
    %357 = vmatpush1.bf16.msra.mxu0 %v336
    %358 = vmatprep.subr.bf16.mxu0 0
    %359 = vmatpush1.bf16.msra.mxu0 %v337
    %360 = vmatprep.subr.bf16.mxu0 0
    %361 = vmatpush1.bf16.msra.mxu0 %v338
    %362 = vmatprep.subr.bf16.mxu0 0
    %363 = vmatpush1.bf16.msra.mxu0 %v339
    %364 = vmatprep.subr.bf16.mxu0 0
    %365 = vmatpush1.bf16.msra.mxu0 0
    %366 = vmatprep.subr.bf16.mxu0 0
    %367 = vmatpush1.bf16.msra.mxu0 0
    %368 = vmatprep.subr.bf16.mxu0 0
    %369 = vmatpush1.bf16.msra.mxu0 0
    %370 = vmatprep.subr.bf16.mxu0 0
    %371 = vmatpush1.bf16.msra.mxu0 0
    %372 = vmatprep.subr.bf16.mxu0 0
    %373 = vmatpush1.bf16.msra.mxu0 0
    %374 = vmatprep.subr.bf16.mxu0 0
    %375 = vmatpush1.bf16.msra.mxu0 0
    %376 = vmatprep.subr.bf16.mxu0 0
    %377 = vmatpush1.bf16.msra.mxu0 0
    %378 = vmatprep.subr.bf16.mxu0 0
    %379 = vmatpush1.bf16.msra.mxu0 0
    %380 = vmatprep.mubr.bf16.mxu0 0
    %381 = vmatmul.mubr.bf16.gmra.mrb[0].mxu0 %v276
    %v382 = vpop.f32.mrb[0].mxu0
    %v383 = vadd.f32 %v298, %v382
    %v384 = vpop.f32.mrb[0].mxu0
    %v385 = vpop.f32.mrb[0].mxu0
    %v386 = vadd.f32 %v298, %v385
    %v387 = vpop.f32.mrb[0].mxu0
    %388 = vdwg.mxu0
    %v389 = vmul.f32 %v383, 0.01
    %v390 = vmul.f32 %v386, 0.01
    %v391 = vmax.f32 %v383, %v389
    %v392 = vmax.f32 %v386, %v390
    %v393 = vpack.c.bf16 %v392, %v391
    %v395 = vunpack.c.l.b16 %v393
    %v396 = vunpack.c.h.b16 %v393
    %v397 = vpack.c.b16 %v395, %v395
    %v398 = vpack.c.b16 %v396, %v396
    %401 = vst [vmem:[%s7] sm:$0xf] %v397
    %402 = vst [vmem:[%s7 + $0x4] sm:$0xf] %v398
    // Predicated region
    $region42: #{mlp_forward.1} parent=1 // pred_check
      _
    $region43: #{mlp_forward.1} parent=1 // pred_check_branch
      %404 = sbr.rel (0) target = $region45
    $region44: #{mlp_forward.1} parent=1 // pred_region
      _
    $region45: #{mlp_forward.1} parent=1 // pred_fallthru
      _
    // Predicated region
    $region46: #{mlp_forward.1} parent=1 // pred_check
      _
    $region47: #{mlp_forward.1} parent=1 // pred_check_branch
      %406 = sbr.rel (0) target = $region49
    $region48: #{mlp_forward.1} parent=1 // pred_region
      _
    $region49: #{mlp_forward.1} parent=1 // pred_fallthru
      _
    %407 = vsyncpa [#allocation3], 1
    %408 = vsyncpa [#allocation5], 1

</llo_original>
